<compile_context>
chip_gen: v7x
topology: tpu7x:2x2x1
jax: 0.10.0
libtpu: 0.0.40
codegen_flags: <defaults>
</compile_context>

<pallas_src>
import jax
import jax.numpy as jnp
from jax.experimental import pallas as pl
from jax.experimental.pallas import tpu as pltpu


NEG_SLOPE = 0.02   # matches torch.nn.LeakyReLU(0.02) in MorphNetwork


def _round_up(x, m):
    return ((x + m - 1) // m) * m


def morph_kernel(z1_ref, z2_ref, w1a_ref, w1b_ref, b1_ref,
                 w2_ref, b2_ref, w3_ref, b3_ref, o_ref):
    cdt = w2_ref.dtype  # matmul operand dtype (f32 default, optionally bf16)

    # Layer 1 (concat fused): h = z1 @ w1[:L] + z2 @ w1[L:] + b1
    h = b1_ref[...] + (
        jnp.dot(z1_ref[...], w1a_ref[...], preferred_element_type=jnp.float32)
        + jnp.dot(z2_ref[...], w1b_ref[...], preferred_element_type=jnp.float32))
    h = jnp.maximum(h, NEG_SLOPE * h)                 # LeakyReLU(0.02)

    # Layer 2
    h = b2_ref[...] + jnp.dot(h.astype(cdt), w2_ref[...],
                              preferred_element_type=jnp.float32)
    h = jnp.maximum(h, NEG_SLOPE * h)                 # LeakyReLU(0.02)

    # Layer 3 (no activation)
    out = b3_ref[...] + jnp.dot(h.astype(cdt), w3_ref[...],
                                preferred_element_type=jnp.float32)
    o_ref[...] = out.astype(o_ref.dtype)


def prepare_kernel_params(params, latent_size, compute_dtype=jnp.float32):
    """One-time prep: split w1 row-wise (fuses the concat). No feature-dim
    padding -- hidden stays 2L wide and the output stays L wide.

    Weights are optionally cast to `compute_dtype` (e.g. bf16) for the MXU;
    biases stay f32 (VPU path, f32 accumulation).
    """
    w1, b1, w2, b2, w3, b3 = params          # w: [in, out], b: [1, out]
    L = latent_size
    cdt = compute_dtype
    w1a = w1[:L, :].astype(cdt)              # rows of w1 multiplying z1
    w1b = w1[L:, :].astype(cdt)              # rows of w1 multiplying z2
    return (w1a, w1b, b1.astype(jnp.float32),
            w2.astype(cdt), b2.astype(jnp.float32),
            w3.astype(cdt), b3.astype(jnp.float32))


def _pick_bm(B, block_batch):
    """Batch tile: as large as allowed, but aim for >= 2 grid steps so the
    'parallel' axis can shard across both TensorCores on v7x. Multiple of 8
    (sublane) unless it equals the full batch."""
    if B <= 16:
        return B
    half = _round_up(pl.cdiv(B, 2), 8)
    bm = min(block_batch, half, B)
    return max(8, (bm // 8) * 8)


def morph_forward(z1, z2, kernel_params, latent_size, *, block_batch=4096):
    """z1, z2: [B, L] float32  ->  [B, L] float32."""
    w1a, w1b, b1, w2, b2, w3, b3 = kernel_params
    B, L = z1.shape
    assert L == latent_size and z2.shape == (B, L)
    H = w2.shape[0]                          # hidden width = 2L (unpadded)
    out_dtype = z1.dtype

    cdt = w1a.dtype                          # matmul operand dtype
    if z1.dtype != cdt:
        z1 = z1.astype(cdt)
        z2 = z2.astype(cdt)

    bm = _pick_bm(B, block_batch)
    grid_b = pl.cdiv(B, bm)
    # No explicit batch padding: Pallas clips the ragged last block on
    # writeback; rows are independent so overhang rows can't corrupt results.

    const = lambda i: (0, 0)                 # constant block -> VMEM-resident

    out = pl.pallas_call(
        morph_kernel,
        out_shape=jax.ShapeDtypeStruct((B, L), out_dtype),
        grid=(grid_b,),
        in_specs=[
            pl.BlockSpec((bm, L), lambda i: (i, 0)),    # z1 (tiled over batch)
            pl.BlockSpec((bm, L), lambda i: (i, 0)),    # z2 (tiled over batch)
            pl.BlockSpec((L, H), const),                # w1a
            pl.BlockSpec((L, H), const),                # w1b
            pl.BlockSpec((1, H), const),                # b1
            pl.BlockSpec((H, H), const),                # w2
            pl.BlockSpec((1, H), const),                # b2
            pl.BlockSpec((H, L), const),                # w3
            pl.BlockSpec((1, L), const),                # b3
        ],
        out_specs=pl.BlockSpec((bm, L), lambda i: (i, 0)),
        compiler_params=pltpu.CompilerParams(
            dimension_semantics=("parallel",)),         # both TCs on v7x
    )(z1, z2, w1a, w1b, b1, w2, b2, w3, b3)

    return out


def init_params(key, latent_size):
    """torch.nn.Linear-style init: U(-1/sqrt(fan_in), 1/sqrt(fan_in)) for both
    weight and bias; weights stored transposed as [in, out]."""
    L = latent_size
    dims = [(2 * L, 2 * L), (2 * L, 2 * L), (2 * L, L)]
    params = []
    for fan_in, fan_out in dims:
        key, kw, kb = jax.random.split(key, 3)
        bound = 1.0 / jnp.sqrt(jnp.float32(fan_in))
        w = jax.random.uniform(kw, (fan_in, fan_out), jnp.float32, -bound, bound)
        b = jax.random.uniform(kb, (1, fan_out), jnp.float32, -bound, bound)
        params.extend([w, b])
    return tuple(params)


def reference_forward(z1, z2, params):
    """Pure-JAX reference mirroring the PyTorch forward exactly."""
    w1, b1, w2, b2, w3, b3 = params
    z = jnp.concatenate([z1, z2], axis=1)
    h = z @ w1 + b1
    h = jnp.where(h > 0, h, NEG_SLOPE * h)
    h = h @ w2 + b2
    h = jnp.where(h > 0, h, NEG_SLOPE * h)
    return h @ w3 + b3


if __name__ == "__main__":
    latent_size = 32
    batch = 8

    key = jax.random.PRNGKey(0)
    kp, k1, k2 = jax.random.split(key, 3)
    params = init_params(kp, latent_size)
    # Default compute_dtype=f32 keeps the 1e-5 check exact; pass
    # compute_dtype=jnp.bfloat16 for ~2-3x MXU throughput if tolerance allows.
    kernel_params = prepare_kernel_params(params, latent_size)

    z1 = jax.random.normal(k1, (batch, latent_size), jnp.float32)
    z2 = jax.random.normal(k2, (batch, latent_size), jnp.float32)

    out = morph_forward(z1, z2, kernel_params, latent_size)
    out = jax.block_until_ready(out)

    ref = reference_forward(z1, z2, params)
    assert out.shape == (batch, latent_size)
    assert jnp.allclose(out, ref, atol=1e-5, rtol=1e-5), \
        float(jnp.max(jnp.abs(out - ref)))

    print("KERNEL_OK")
</pallas_src>

<mosaic_0001>
module attributes {stable_mosaic.version = 11 : i64} {
  func.func @morph_kernel(%arg0: i32, %arg1: memref<8x32xf32, #tpu.memory_space<vmem>>, %arg2: memref<8x32xf32, #tpu.memory_space<vmem>>, %arg3: memref<32x64xf32, #tpu.memory_space<vmem>>, %arg4: memref<32x64xf32, #tpu.memory_space<vmem>>, %arg5: memref<1x64xf32, #tpu.memory_space<vmem>>, %arg6: memref<64x64xf32, #tpu.memory_space<vmem>>, %arg7: memref<1x64xf32, #tpu.memory_space<vmem>>, %arg8: memref<64x32xf32, #tpu.memory_space<vmem>>, %arg9: memref<1x32xf32, #tpu.memory_space<vmem>>, %arg10: memref<8x32xf32, #tpu.memory_space<vmem>>) attributes {dimension_semantics = [#tpu.dimension_semantics<parallel>], iteration_bounds = array<i64: 1>, scalar_prefetch = 0 : i64, scratch_operands = 0 : i64, tpu.core_type = #tpu.core_type<tc>, window_params = [{transform_indices = @transform_0, window_bounds = array<i64: 8, 32>}, {transform_indices = @transform_1, window_bounds = array<i64: 8, 32>}, {pipeline_mode = #tpu.pipeline_mode<synchronous>, transform_indices = @transform_2, window_bounds = array<i64: 32, 64>}, {pipeline_mode = #tpu.pipeline_mode<synchronous>, transform_indices = @transform_3, window_bounds = array<i64: 32, 64>}, {pipeline_mode = #tpu.pipeline_mode<synchronous>, transform_indices = @transform_4, window_bounds = array<i64: 1, 64>}, {pipeline_mode = #tpu.pipeline_mode<synchronous>, transform_indices = @transform_5, window_bounds = array<i64: 64, 64>}, {pipeline_mode = #tpu.pipeline_mode<synchronous>, transform_indices = @transform_6, window_bounds = array<i64: 1, 64>}, {pipeline_mode = #tpu.pipeline_mode<synchronous>, transform_indices = @transform_7, window_bounds = array<i64: 64, 32>}, {pipeline_mode = #tpu.pipeline_mode<synchronous>, transform_indices = @transform_8, window_bounds = array<i64: 1, 32>}, {transform_indices = @transform_9, window_bounds = array<i64: 8, 32>}]} {
    %c0 = arith.constant 0 : index
    %c0_0 = arith.constant 0 : index
    %0 = vector.load %arg5[%c0, %c0_0] : memref<1x64xf32, #tpu.memory_space<vmem>>, vector<1x64xf32>
    %c0_1 = arith.constant 0 : index
    %c0_2 = arith.constant 0 : index
    %1 = vector.load %arg1[%c0_1, %c0_2] : memref<8x32xf32, #tpu.memory_space<vmem>>, vector<8x32xf32>
    %c0_3 = arith.constant 0 : index
    %c0_4 = arith.constant 0 : index
    %2 = vector.load %arg3[%c0_3, %c0_4] : memref<32x64xf32, #tpu.memory_space<vmem>>, vector<32x64xf32>
    %cst = arith.constant dense<0.000000e+00> : vector<8x64xf32>
    %3 = tpu.matmul %1, %2, %cst {dimension_numbers = #tpu.dot_dimension_numbers<[1], [0], [0], [1], [0, 0, 1, 1], [], []>} : vector<8x32xf32>, vector<32x64xf32>, vector<8x64xf32> -> vector<8x64xf32>
    %c0_5 = arith.constant 0 : index
    %c0_6 = arith.constant 0 : index
    %4 = vector.load %arg2[%c0_5, %c0_6] : memref<8x32xf32, #tpu.memory_space<vmem>>, vector<8x32xf32>
    %c0_7 = arith.constant 0 : index
    %c0_8 = arith.constant 0 : index
    %5 = vector.load %arg4[%c0_7, %c0_8] : memref<32x64xf32, #tpu.memory_space<vmem>>, vector<32x64xf32>
    %cst_9 = arith.constant dense<0.000000e+00> : vector<8x64xf32>
    %6 = tpu.matmul %4, %5, %cst_9 {dimension_numbers = #tpu.dot_dimension_numbers<[1], [0], [0], [1], [0, 0, 1, 1], [], []>} : vector<8x32xf32>, vector<32x64xf32>, vector<8x64xf32> -> vector<8x64xf32>
    %7 = arith.addf %3, %6 : vector<8x64xf32>
    %8 = vector.broadcast %0 : vector<1x64xf32> to vector<8x64xf32>
    %9 = arith.addf %8, %7 : vector<8x64xf32>
    %cst_10 = arith.constant 2.000000e-02 : f32
    %10 = vector.broadcast %cst_10 : f32 to vector<8x64xf32>
    %11 = arith.mulf %10, %9 : vector<8x64xf32>
    %12 = arith.maximumf %9, %11 : vector<8x64xf32>
    %c0_11 = arith.constant 0 : index
    %c0_12 = arith.constant 0 : index
    %13 = vector.load %arg7[%c0_11, %c0_12] : memref<1x64xf32, #tpu.memory_space<vmem>>, vector<1x64xf32>
    %c0_13 = arith.constant 0 : index
    %c0_14 = arith.constant 0 : index
    %14 = vector.load %arg6[%c0_13, %c0_14] : memref<64x64xf32, #tpu.memory_space<vmem>>, vector<64x64xf32>
    %cst_15 = arith.constant dense<0.000000e+00> : vector<8x64xf32>
    %15 = tpu.matmul %12, %14, %cst_15 {dimension_numbers = #tpu.dot_dimension_numbers<[1], [0], [0], [1], [0, 0, 1, 1], [], []>} : vector<8x64xf32>, vector<64x64xf32>, vector<8x64xf32> -> vector<8x64xf32>
    %16 = vector.broadcast %13 : vector<1x64xf32> to vector<8x64xf32>
    %17 = arith.addf %16, %15 : vector<8x64xf32>
    %cst_16 = arith.constant 2.000000e-02 : f32
    %18 = vector.broadcast %cst_16 : f32 to vector<8x64xf32>
    %19 = arith.mulf %18, %17 : vector<8x64xf32>
    %20 = arith.maximumf %17, %19 : vector<8x64xf32>
    %c0_17 = arith.constant 0 : index
    %c0_18 = arith.constant 0 : index
    %21 = vector.load %arg9[%c0_17, %c0_18] : memref<1x32xf32, #tpu.memory_space<vmem>>, vector<1x32xf32>
    %c0_19 = arith.constant 0 : index
    %c0_20 = arith.constant 0 : index
    %22 = vector.load %arg8[%c0_19, %c0_20] : memref<64x32xf32, #tpu.memory_space<vmem>>, vector<64x32xf32>
    %cst_21 = arith.constant dense<0.000000e+00> : vector<8x32xf32>
    %23 = tpu.matmul %20, %22, %cst_21 {dimension_numbers = #tpu.dot_dimension_numbers<[1], [0], [0], [1], [0, 0, 1, 1], [], []>} : vector<8x64xf32>, vector<64x32xf32>, vector<8x32xf32> -> vector<8x32xf32>
    %24 = vector.broadcast %21 : vector<1x32xf32> to vector<8x32xf32>
    %25 = arith.addf %24, %23 : vector<8x32xf32>
    %c0_22 = arith.constant 0 : index
    %c0_23 = arith.constant 0 : index
    %26 = vector.load %arg10[%c0_22, %c0_23] : memref<8x32xf32, #tpu.memory_space<vmem>>, vector<8x32xf32>
    tpu.vector_store %arg10[%c0_22, %c0_23], %25 {strides = array<i32>} : memref<8x32xf32, #tpu.memory_space<vmem>>, vector<8x32xf32>,
    return
  }
  func.func @transform_0(%arg0: i32) -> (i32, i32) {
    %c0_i32 = arith.constant 0 : i32
    %c0_i32_0 = arith.constant 0 : i32
    return %arg0, %c0_i32 : i32, i32
  }
  func.func @transform_1(%arg0: i32) -> (i32, i32) {
    %c0_i32 = arith.constant 0 : i32
    %c0_i32_0 = arith.constant 0 : i32
    return %arg0, %c0_i32 : i32, i32
  }
  func.func @transform_2(%arg0: i32) -> (i32, i32) {
    %c0_i32 = arith.constant 0 : i32
    %c0_i32_0 = arith.constant 0 : i32
    %c0_i32_1 = arith.constant 0 : i32
    return %c0_i32, %c0_i32_0 : i32, i32
  }
  func.func @transform_3(%arg0: i32) -> (i32, i32) {
    %c0_i32 = arith.constant 0 : i32
    %c0_i32_0 = arith.constant 0 : i32
    %c0_i32_1 = arith.constant 0 : i32
    return %c0_i32, %c0_i32_0 : i32, i32
  }
  func.func @transform_4(%arg0: i32) -> (i32, i32) {
    %c0_i32 = arith.constant 0 : i32
    %c0_i32_0 = arith.constant 0 : i32
    %c0_i32_1 = arith.constant 0 : i32
    return %c0_i32, %c0_i32_0 : i32, i32
  }
  func.func @transform_5(%arg0: i32) -> (i32, i32) {
    %c0_i32 = arith.constant 0 : i32
    %c0_i32_0 = arith.constant 0 : i32
    %c0_i32_1 = arith.constant 0 : i32
    return %c0_i32, %c0_i32_0 : i32, i32
  }
  func.func @transform_6(%arg0: i32) -> (i32, i32) {
    %c0_i32 = arith.constant 0 : i32
    %c0_i32_0 = arith.constant 0 : i32
    %c0_i32_1 = arith.constant 0 : i32
    return %c0_i32, %c0_i32_0 : i32, i32
  }
  func.func @transform_7(%arg0: i32) -> (i32, i32) {
    %c0_i32 = arith.constant 0 : i32
    %c0_i32_0 = arith.constant 0 : i32
    %c0_i32_1 = arith.constant 0 : i32
    return %c0_i32, %c0_i32_0 : i32, i32
  }
  func.func @transform_8(%arg0: i32) -> (i32, i32) {
    %c0_i32 = arith.constant 0 : i32
    %c0_i32_0 = arith.constant 0 : i32
    %c0_i32_1 = arith.constant 0 : i32
    return %c0_i32, %c0_i32_0 : i32, i32
  }
  func.func @transform_9(%arg0: i32) -> (i32, i32) {
    %c0_i32 = arith.constant 0 : i32
    %c0_i32_0 = arith.constant 0 : i32
    return %arg0, %c0_i32 : i32, i32
  }
}

</mosaic_0001>

<llo_original>
// kernel: tpu_custom_call.1
$region0: #{tpu_custom_call.1}
  #allocation0 [shape = 'u32[]', space=smem, size = 0x4, offset = 0x4, fixed_abs, tag = 'smem constant byte address 0x4 - core index']
  #allocation1 [shape = 'u32[144,128]{1,0:T(1,128)}', space=vmem, size = 0x12000, scoped, tag = 'internal scratch']
  %s0 = inlined_call_operand.vmem [shape: f32[8,32], index: 0, kind: input, shape index: {}]
  %s1 = inlined_call_operand.vmem [shape: f32[8,32], index: 1, kind: input, shape index: {}]
  %s2 = inlined_call_operand.vmem [shape: f32[32,64], index: 2, kind: input, shape index: {}]
  %s3 = inlined_call_operand.hbm [shape: f32[32,64], index: 3, kind: input, shape index: {}]
  %s4 = inlined_call_operand.vmem [shape: f32[1,64], index: 4, kind: input, shape index: {}]
  %s5 = inlined_call_operand.vmem [shape: f32[64,64], index: 5, kind: input, shape index: {}]
  %s6 = inlined_call_operand.vmem [shape: f32[1,64], index: 6, kind: input, shape index: {}]
  %s7 = inlined_call_operand.vmem [shape: f32[64,32], index: 7, kind: input, shape index: {}]
  %s8 = inlined_call_operand.vmem [shape: f32[1,32], index: 8, kind: input, shape index: {}]
  %s9 = inlined_call_operand.hbm [shape: f32[8,32], index: 9, kind: output, shape index: {}]
  %s10 = sld [smem:[#allocation0]]
  $region50: #{tpu_custom_call.1} parent=0
    _
  %s12 = ssub.s32 1, %s10
  %s13 = scalar_select 0, %s12, %s10
  $region1: #{tpu_custom_call.1} parent=0
    #allocation2 [shape = 'u8[16384]{0}', space=vmem, size = 0x4000, scoped, tag = 'input window, operand 3, single buffered']
    #allocation3 [shape = 's32[1]{0}', space=sflag, size = 0x4, scoped, tag = 'scoped memory for tpu_custom_call.1']
    #allocation4 [shape = 's32[1]{0}', space=sflag, size = 0x4, scoped, tag = 'scoped memory for tpu_custom_call.1']
    #allocation5 [shape = 'u8[4096]{0}', space=vmem, size = 0x1000, scoped, tag = 'output window, operand 0, single buffered']
    %14 = vsyncpa [#allocation3], 0
    %15 = vsyncpa [#allocation4], 0
    // Predicated region
    $region2: #{tpu_custom_call.1} parent=1 // pred_check
      _
    $region3: #{tpu_custom_call.1} parent=1 // pred_check_branch
      %17 = sbr.rel (0) target = $region5
    $region4: #{tpu_custom_call.1} parent=1 // pred_region
      _
    $region5: #{tpu_custom_call.1} parent=1 // pred_fallthru
      _
    // Predicated region
    $region6: #{tpu_custom_call.1} parent=1 // pred_check
      _
    $region7: #{tpu_custom_call.1} parent=1 // pred_check_branch
      %19 = sbr.rel (0) target = $region9
    $region8: #{tpu_custom_call.1} parent=1 // pred_region
      _
    $region9: #{tpu_custom_call.1} parent=1 // pred_fallthru
      _
    // Predicated region
    $region10: #{tpu_custom_call.1} parent=1 // pred_check
      _
    $region11: #{tpu_custom_call.1} parent=1 // pred_check_branch
      %21 = sbr.rel (0) target = $region13
    $region12: #{tpu_custom_call.1} parent=1 // pred_region
      _
    $region13: #{tpu_custom_call.1} parent=1 // pred_fallthru
      _
    // Predicated region
    $region14: #{tpu_custom_call.1} parent=1 // pred_check
      _
    $region15: #{tpu_custom_call.1} parent=1 // pred_check_branch
      %23 = sbr.rel (0) target = $region17
    $region16: #{tpu_custom_call.1} parent=1 // pred_region
      %s25 = ssub.s32 512, 512
      %26 = vsyncadd [#allocation3], %s25
      %s27 = sshll.u32 [#allocation2], 4
      %s28 = int_to_ptr.vmem [resolvable:$true] %s27
      %33 = dma.hbm_to_vmem [thread:$0]  %s3, 512, %s28, [#allocation3], 128, 128, 8
    $region17: #{tpu_custom_call.1} parent=1 // pred_fallthru
      _
    // Predicated region
    $region18: #{tpu_custom_call.1} parent=1 // pred_check
      _
    $region19: #{tpu_custom_call.1} parent=1 // pred_check_branch
      %35 = sbr.rel (0) target = $region21
    $region20: #{tpu_custom_call.1} parent=1 // pred_region
      _
    $region21: #{tpu_custom_call.1} parent=1 // pred_fallthru
      _
    // Predicated region
    $region22: #{tpu_custom_call.1} parent=1 // pred_check
      _
    $region23: #{tpu_custom_call.1} parent=1 // pred_check_branch
      %37 = sbr.rel (0) target = $region25
    $region24: #{tpu_custom_call.1} parent=1 // pred_region
      _
    $region25: #{tpu_custom_call.1} parent=1 // pred_fallthru
      _
    // Predicated region
    $region26: #{tpu_custom_call.1} parent=1 // pred_check
      _
    $region27: #{tpu_custom_call.1} parent=1 // pred_check_branch
      %39 = sbr.rel (0) target = $region29
    $region28: #{tpu_custom_call.1} parent=1 // pred_region
      _
    $region29: #{tpu_custom_call.1} parent=1 // pred_fallthru
      _
    // Predicated region
    $region30: #{tpu_custom_call.1} parent=1 // pred_check
      _
    $region31: #{tpu_custom_call.1} parent=1 // pred_check_branch
      %41 = sbr.rel (0) target = $region33
    $region32: #{tpu_custom_call.1} parent=1 // pred_region
      _
    $region33: #{tpu_custom_call.1} parent=1 // pred_fallthru
      _
    // Predicated region
    $region34: #{tpu_custom_call.1} parent=1 // pred_check
      _
    $region35: #{tpu_custom_call.1} parent=1 // pred_check_branch
      %43 = sbr.rel (0) target = $region37
    $region36: #{tpu_custom_call.1} parent=1 // pred_region
      _
    $region37: #{tpu_custom_call.1} parent=1 // pred_fallthru
      _
    // Predicated region
    $region38: #{tpu_custom_call.1} parent=1 // pred_check
      _
    $region39: #{tpu_custom_call.1} parent=1 // pred_check_branch
      %45 = sbr.rel (0) target = $region41
    $region40: #{tpu_custom_call.1} parent=1 // pred_region
      %46 = dma.done [#allocation3], 512
    $region41: #{tpu_custom_call.1} parent=1 // pred_fallthru
      _
    %v47 = vld [vmem:[%s4] sm:$0x1]
    %v48 = vld [vmem:[%s0] sm:$0xff]
    %v49 = vld [vmem:[%s2] sm:$0xff]
    %v50 = vld [vmem:[%s2 + $0x8] sm:$0xff]
    %v51 = vld [vmem:[%s2 + $0x10] sm:$0xff]
    %v52 = vld [vmem:[%s2 + $0x18] sm:$0xff]
    %v53 = vld [vmem:[%s1] sm:$0xff]
    %v54 = vld [vmem:[#allocation2] sm:$0xff]
    %v55 = vld [vmem:[#allocation2 + $0x8] sm:$0xff]
    %v56 = vld [vmem:[#allocation2 + $0x10] sm:$0xff]
    %v57 = vld [vmem:[#allocation2 + $0x18] sm:$0xff]
    %vm58 = vcmask 261120
    %v60 = vsel %vm58, %v53, 0
    %62 = vmatprep.subr.mxu0 0.0
    %63 = vmatpush1.msra.mxu0 %v54
    %64 = vmatprep.subr.mxu0 0.0
    %65 = vmatpush1.msra.mxu0 %v55
    %66 = vmatprep.subr.mxu0 0.0
    %67 = vmatpush1.msra.mxu0 %v56
    %68 = vmatprep.subr.mxu0 0.0
    %69 = vmatpush1.msra.mxu0 %v57
    %70 = vmatprep.subr.mxu0 0.0
    %71 = vmatpush1.msra.mxu0 0.0
    %72 = vmatprep.subr.mxu0 0.0
    %73 = vmatpush1.msra.mxu0 0.0
    %74 = vmatprep.subr.mxu0 0.0
    %75 = vmatpush1.msra.mxu0 0.0
    %76 = vmatprep.subr.mxu0 0.0
    %77 = vmatpush1.msra.mxu0 0.0
    %78 = vmatprep.subr.mxu0 0.0
    %79 = vmatpush1.msra.mxu0 0.0
    %80 = vmatprep.subr.mxu0 0.0
    %81 = vmatpush1.msra.mxu0 0.0
    %82 = vmatprep.subr.mxu0 0.0
    %83 = vmatpush1.msra.mxu0 0.0
    %84 = vmatprep.subr.mxu0 0.0
    %85 = vmatpush1.msra.mxu0 0.0
    %86 = vmatprep.subr.mxu0 0.0
    %87 = vmatpush1.msra.mxu0 0.0
    %88 = vmatprep.subr.mxu0 0.0
    %89 = vmatpush1.msra.mxu0 0.0
    %90 = vmatprep.subr.mxu0 0.0
    %91 = vmatpush1.msra.mxu0 0.0
    %92 = vmatprep.subr.mxu0 0.0
    %93 = vmatpush1.msra.mxu0 0.0
    %94 = vmatprep.subr.mxu0 0.0
    %95 = vmatpush1.msra.mxu0 0.0
    %96 = vmatprep.subr.mxu0 0.0
    %97 = vmatpush1.msra.mxu0 0.0
    %98 = vmatprep.subr.mxu0 0.0
    %99 = vmatpush1.msra.mxu0 0.0
    %100 = vmatprep.subr.mxu0 0.0
    %101 = vmatpush1.msra.mxu0 0.0
    %102 = vmatprep.subr.mxu0 0.0
    %103 = vmatpush1.msra.mxu0 0.0
    %104 = vmatprep.subr.mxu0 0.0
    %105 = vmatpush1.msra.mxu0 0.0
    %106 = vmatprep.subr.mxu0 0.0
    %107 = vmatpush1.msra.mxu0 0.0
    %108 = vmatprep.subr.mxu0 0.0
    %109 = vmatpush1.msra.mxu0 0.0
    %110 = vmatprep.subr.mxu0 0.0
    %111 = vmatpush1.msra.mxu0 0.0
    %112 = vmatprep.subr.mxu0 0.0
    %113 = vmatpush1.msra.mxu0 0.0
    %114 = vmatprep.subr.mxu0 0.0
    %115 = vmatpush1.msra.mxu0 0.0
    %116 = vmatprep.subr.mxu0 0.0
    %117 = vmatpush1.msra.mxu0 0.0
    %118 = vmatprep.subr.mxu0 0.0
    %119 = vmatpush1.msra.mxu0 0.0
    %120 = vmatprep.subr.mxu0 0.0
    %121 = vmatpush1.msra.mxu0 0.0
    %122 = vmatprep.subr.mxu0 0.0
    %123 = vmatpush1.msra.mxu0 0.0
    %124 = vmatprep.subr.mxu0 0.0
    %125 = vmatpush1.msra.mxu0 0.0
    %126 = vmatprep.mubr.f32.mxu0 0.0
    %127 = vmatmul.mubr.f32.gmra.mrb[0].mxu0 %v60
    %v128 = vpop.f32.mrb[0].mxu0
    %v129 = vadd.f32 0.0, %v128
    %v130 = vpop.f32.mrb[0].mxu0
    %131 = vdwg.mxu0
    %v133 = vsel %vm58, %v48, 0
    %135 = vmatprep.subr.mxu0 0.0
    %136 = vmatpush1.msra.mxu0 %v49
    %137 = vmatprep.subr.mxu0 0.0
    %138 = vmatpush1.msra.mxu0 %v50
    %139 = vmatprep.subr.mxu0 0.0
    %140 = vmatpush1.msra.mxu0 %v51
    %141 = vmatprep.subr.mxu0 0.0
    %142 = vmatpush1.msra.mxu0 %v52
    %143 = vmatprep.subr.mxu0 0.0
    %144 = vmatpush1.msra.mxu0 0.0
    %145 = vmatprep.subr.mxu0 0.0
    %146 = vmatpush1.msra.mxu0 0.0
    %147 = vmatprep.subr.mxu0 0.0
    %148 = vmatpush1.msra.mxu0 0.0
    %149 = vmatprep.subr.mxu0 0.0
    %150 = vmatpush1.msra.mxu0 0.0
    %151 = vmatprep.subr.mxu0 0.0
    %152 = vmatpush1.msra.mxu0 0.0
    %153 = vmatprep.subr.mxu0 0.0
    %154 = vmatpush1.msra.mxu0 0.0
    %155 = vmatprep.subr.mxu0 0.0
    %156 = vmatpush1.msra.mxu0 0.0
    %157 = vmatprep.subr.mxu0 0.0
    %158 = vmatpush1.msra.mxu0 0.0
    %159 = vmatprep.subr.mxu0 0.0
    %160 = vmatpush1.msra.mxu0 0.0
    %161 = vmatprep.subr.mxu0 0.0
    %162 = vmatpush1.msra.mxu0 0.0
    %163 = vmatprep.subr.mxu0 0.0
    %164 = vmatpush1.msra.mxu0 0.0
    %165 = vmatprep.subr.mxu0 0.0
    %166 = vmatpush1.msra.mxu0 0.0
    %167 = vmatprep.subr.mxu0 0.0
    %168 = vmatpush1.msra.mxu0 0.0
    %169 = vmatprep.subr.mxu0 0.0
    %170 = vmatpush1.msra.mxu0 0.0
    %171 = vmatprep.subr.mxu0 0.0
    %172 = vmatpush1.msra.mxu0 0.0
    %173 = vmatprep.subr.mxu0 0.0
    %174 = vmatpush1.msra.mxu0 0.0
    %175 = vmatprep.subr.mxu0 0.0
    %176 = vmatpush1.msra.mxu0 0.0
    %177 = vmatprep.subr.mxu0 0.0
    %178 = vmatpush1.msra.mxu0 0.0
    %179 = vmatprep.subr.mxu0 0.0
    %180 = vmatpush1.msra.mxu0 0.0
    %181 = vmatprep.subr.mxu0 0.0
    %182 = vmatpush1.msra.mxu0 0.0
    %183 = vmatprep.subr.mxu0 0.0
    %184 = vmatpush1.msra.mxu0 0.0
    %185 = vmatprep.subr.mxu0 0.0
    %186 = vmatpush1.msra.mxu0 0.0
    %187 = vmatprep.subr.mxu0 0.0
    %188 = vmatpush1.msra.mxu0 0.0
    %189 = vmatprep.subr.mxu0 0.0
    %190 = vmatpush1.msra.mxu0 0.0
    %191 = vmatprep.subr.mxu0 0.0
    %192 = vmatpush1.msra.mxu0 0.0
    %193 = vmatprep.subr.mxu0 0.0
    %194 = vmatpush1.msra.mxu0 0.0
    %195 = vmatprep.subr.mxu0 0.0
    %196 = vmatpush1.msra.mxu0 0.0
    %197 = vmatprep.subr.mxu0 0.0
    %198 = vmatpush1.msra.mxu0 0.0
    %199 = vmatprep.mubr.f32.mxu0 0.0
    %200 = vmatmul.mubr.f32.gmra.mrb[0].mxu0 %v133
    %v201 = vpop.f32.mrb[0].mxu0
    %v202 = vadd.f32 %v129, %v201
    %v203 = vpop.f32.mrb[0].mxu0
    %204 = vdwg.mxu0
    %v206 = vlaneseq
    %v207 = vshrl.u32 %v206, 7
    %v208 = vsub.s32 0, %v207
    %v209 = vrot.slane %v47, %v208
    %v211 = vadd.f32 %v209, %v202
    %v212 = vmul.f32 %v211, 0.02
    %v213 = vmax.f32 %v211, %v212
    %v214 = vld [vmem:[%s6] sm:$0x1]
    %v215 = vld [vmem:[%s5] sm:$0xff]
    %v216 = vld [vmem:[%s5 + $0x8] sm:$0xff]
    %v217 = vld [vmem:[%s5 + $0x10] sm:$0xff]
    %v218 = vld [vmem:[%s5 + $0x18] sm:$0xff]
    %v219 = vld [vmem:[%s5 + $0x20] sm:$0xff]
    %v220 = vld [vmem:[%s5 + $0x28] sm:$0xff]
    %v221 = vld [vmem:[%s5 + $0x30] sm:$0xff]
    %v222 = vld [vmem:[%s5 + $0x38] sm:$0xff]
    %vm223 = vcmask 523264
    %v225 = vsel %vm223, %v213, 0
    %227 = vmatprep.subr.mxu0 0.0
    %228 = vmatpush1.msra.mxu0 %v215
    %229 = vmatprep.subr.mxu0 0.0
    %230 = vmatpush1.msra.mxu0 %v216
    %231 = vmatprep.subr.mxu0 0.0
    %232 = vmatpush1.msra.mxu0 %v217
    %233 = vmatprep.subr.mxu0 0.0
    %234 = vmatpush1.msra.mxu0 %v218
    %235 = vmatprep.subr.mxu0 0.0
    %236 = vmatpush1.msra.mxu0 %v219
    %237 = vmatprep.subr.mxu0 0.0
    %238 = vmatpush1.msra.mxu0 %v220
    %239 = vmatprep.subr.mxu0 0.0
    %240 = vmatpush1.msra.mxu0 %v221
    %241 = vmatprep.subr.mxu0 0.0
    %242 = vmatpush1.msra.mxu0 %v222
    %243 = vmatprep.subr.mxu0 0.0
    %244 = vmatpush1.msra.mxu0 0.0
    %245 = vmatprep.subr.mxu0 0.0
    %246 = vmatpush1.msra.mxu0 0.0
    %247 = vmatprep.subr.mxu0 0.0
    %248 = vmatpush1.msra.mxu0 0.0
    %249 = vmatprep.subr.mxu0 0.0
    %250 = vmatpush1.msra.mxu0 0.0
    %251 = vmatprep.subr.mxu0 0.0
    %252 = vmatpush1.msra.mxu0 0.0
    %253 = vmatprep.subr.mxu0 0.0
    %254 = vmatpush1.msra.mxu0 0.0
    %255 = vmatprep.subr.mxu0 0.0
    %256 = vmatpush1.msra.mxu0 0.0
    %257 = vmatprep.subr.mxu0 0.0
    %258 = vmatpush1.msra.mxu0 0.0
    %259 = vmatprep.subr.mxu0 0.0
    %260 = vmatpush1.msra.mxu0 0.0
    %261 = vmatprep.subr.mxu0 0.0
    %262 = vmatpush1.msra.mxu0 0.0
    %263 = vmatprep.subr.mxu0 0.0
    %264 = vmatpush1.msra.mxu0 0.0
    %265 = vmatprep.subr.mxu0 0.0
    %266 = vmatpush1.msra.mxu0 0.0
    %267 = vmatprep.subr.mxu0 0.0
    %268 = vmatpush1.msra.mxu0 0.0
    %269 = vmatprep.subr.mxu0 0.0
    %270 = vmatpush1.msra.mxu0 0.0
    %271 = vmatprep.subr.mxu0 0.0
    %272 = vmatpush1.msra.mxu0 0.0
    %273 = vmatprep.subr.mxu0 0.0
    %274 = vmatpush1.msra.mxu0 0.0
    %275 = vmatprep.subr.mxu0 0.0
    %276 = vmatpush1.msra.mxu0 0.0
    %277 = vmatprep.subr.mxu0 0.0
    %278 = vmatpush1.msra.mxu0 0.0
    %279 = vmatprep.subr.mxu0 0.0
    %280 = vmatpush1.msra.mxu0 0.0
    %281 = vmatprep.subr.mxu0 0.0
    %282 = vmatpush1.msra.mxu0 0.0
    %283 = vmatprep.subr.mxu0 0.0
    %284 = vmatpush1.msra.mxu0 0.0
    %285 = vmatprep.subr.mxu0 0.0
    %286 = vmatpush1.msra.mxu0 0.0
    %287 = vmatprep.subr.mxu0 0.0
    %288 = vmatpush1.msra.mxu0 0.0
    %289 = vmatprep.subr.mxu0 0.0
    %290 = vmatpush1.msra.mxu0 0.0
    %291 = vmatprep.mubr.f32.mxu0 0.0
    %292 = vmatmul.mubr.f32.gmra.mrb[0].mxu0 %v225
    %v293 = vpop.f32.mrb[0].mxu0
    %v294 = vadd.f32 0.0, %v293
    %v295 = vpop.f32.mrb[0].mxu0
    %296 = vdwg.mxu0
    %v298 = vlaneseq
    %v299 = vshrl.u32 %v298, 7
    %v300 = vsub.s32 0, %v299
    %v301 = vrot.slane %v214, %v300
    %v303 = vadd.f32 %v301, %v294
    %v304 = vmul.f32 %v303, 0.02
    %v305 = vmax.f32 %v303, %v304
    %v306 = vld [vmem:[%s8] sm:$0x1]
    %v307 = vld [vmem:[%s7] sm:$0xff]
    %v308 = vld [vmem:[%s7 + $0x8] sm:$0xff]
    %v309 = vld [vmem:[%s7 + $0x10] sm:$0xff]
    %v310 = vld [vmem:[%s7 + $0x18] sm:$0xff]
    %v311 = vld [vmem:[%s7 + $0x20] sm:$0xff]
    %v312 = vld [vmem:[%s7 + $0x28] sm:$0xff]
    %v313 = vld [vmem:[%s7 + $0x30] sm:$0xff]
    %v314 = vld [vmem:[%s7 + $0x38] sm:$0xff]
    %v316 = vsel %vm223, %v305, 0
    %318 = vmatprep.subr.mxu0 0.0
    %319 = vmatpush1.msra.mxu0 %v307
    %320 = vmatprep.subr.mxu0 0.0
    %321 = vmatpush1.msra.mxu0 %v308
    %322 = vmatprep.subr.mxu0 0.0
    %323 = vmatpush1.msra.mxu0 %v309
    %324 = vmatprep.subr.mxu0 0.0
    %325 = vmatpush1.msra.mxu0 %v310
    %326 = vmatprep.subr.mxu0 0.0
    %327 = vmatpush1.msra.mxu0 %v311
    %328 = vmatprep.subr.mxu0 0.0
    %329 = vmatpush1.msra.mxu0 %v312
    %330 = vmatprep.subr.mxu0 0.0
    %331 = vmatpush1.msra.mxu0 %v313
    %332 = vmatprep.subr.mxu0 0.0
    %333 = vmatpush1.msra.mxu0 %v314
    %334 = vmatprep.subr.mxu0 0.0
    %335 = vmatpush1.msra.mxu0 0.0
    %336 = vmatprep.subr.mxu0 0.0
    %337 = vmatpush1.msra.mxu0 0.0
    %338 = vmatprep.subr.mxu0 0.0
    %339 = vmatpush1.msra.mxu0 0.0
    %340 = vmatprep.subr.mxu0 0.0
    %341 = vmatpush1.msra.mxu0 0.0
    %342 = vmatprep.subr.mxu0 0.0
    %343 = vmatpush1.msra.mxu0 0.0
    %344 = vmatprep.subr.mxu0 0.0
    %345 = vmatpush1.msra.mxu0 0.0
    %346 = vmatprep.subr.mxu0 0.0
    %347 = vmatpush1.msra.mxu0 0.0
    %348 = vmatprep.subr.mxu0 0.0
    %349 = vmatpush1.msra.mxu0 0.0
    %350 = vmatprep.subr.mxu0 0.0
    %351 = vmatpush1.msra.mxu0 0.0
    %352 = vmatprep.subr.mxu0 0.0
    %353 = vmatpush1.msra.mxu0 0.0
    %354 = vmatprep.subr.mxu0 0.0
    %355 = vmatpush1.msra.mxu0 0.0
    %356 = vmatprep.subr.mxu0 0.0
    %357 = vmatpush1.msra.mxu0 0.0
    %358 = vmatprep.subr.mxu0 0.0
    %359 = vmatpush1.msra.mxu0 0.0
    %360 = vmatprep.subr.mxu0 0.0
    %361 = vmatpush1.msra.mxu0 0.0
    %362 = vmatprep.subr.mxu0 0.0
    %363 = vmatpush1.msra.mxu0 0.0
    %364 = vmatprep.subr.mxu0 0.0
    %365 = vmatpush1.msra.mxu0 0.0
    %366 = vmatprep.subr.mxu0 0.0
    %367 = vmatpush1.msra.mxu0 0.0
    %368 = vmatprep.subr.mxu0 0.0
    %369 = vmatpush1.msra.mxu0 0.0
    %370 = vmatprep.subr.mxu0 0.0
    %371 = vmatpush1.msra.mxu0 0.0
    %372 = vmatprep.subr.mxu0 0.0
    %373 = vmatpush1.msra.mxu0 0.0
    %374 = vmatprep.subr.mxu0 0.0
    %375 = vmatpush1.msra.mxu0 0.0
    %376 = vmatprep.subr.mxu0 0.0
    %377 = vmatpush1.msra.mxu0 0.0
    %378 = vmatprep.subr.mxu0 0.0
    %379 = vmatpush1.msra.mxu0 0.0
    %380 = vmatprep.subr.mxu0 0.0
    %381 = vmatpush1.msra.mxu0 0.0
    %382 = vmatprep.mubr.f32.mxu0 0.0
    %383 = vmatmul.mubr.f32.gmra.mrb[0].mxu0 %v316
    %v384 = vpop.f32.mrb[0].mxu0
    %v385 = vadd.f32 0.0, %v384
    %v386 = vpop.f32.mrb[0].mxu0
    %387 = vdwg.mxu0
    %v389 = vlaneseq
    %v390 = vshrl.u32 %v389, 7
    %v391 = vsub.s32 0, %v390
    %v392 = vrot.slane %v306, %v391
    %v394 = vadd.f32 %v392, %v385
    %395 = vst.msk [vmem:[#allocation5] sm:$0xff] %vm58, %v394
    // Predicated region
    $region42: #{tpu_custom_call.1} parent=1 // pred_check
      _
    $region43: #{tpu_custom_call.1} parent=1 // pred_check_branch
      %397 = sbr.rel (0) target = $region45
    $region44: #{tpu_custom_call.1} parent=1 // pred_region
      %s399 = ssub.s32 128, 128
      %400 = vsyncadd [#allocation4], %s399
      %s402 = sshll.u32 [#allocation5], 4
      %s403 = int_to_ptr.vmem [resolvable:$true] %s402
      %405 = dma.vmem_to_hbm [thread:$0]  %s403, 128, %s9, [#allocation4]
    $region45: #{tpu_custom_call.1} parent=1 // pred_fallthru
      _
    // Predicated region
    $region46: #{tpu_custom_call.1} parent=1 // pred_check
      _
    $region47: #{tpu_custom_call.1} parent=1 // pred_check_branch
      %407 = sbr.rel (0) target = $region49
    $region48: #{tpu_custom_call.1} parent=1 // pred_region
      %408 = dma.done [#allocation4], 128
    $region49: #{tpu_custom_call.1} parent=1 // pred_fallthru
      _
    %409 = vsyncpa [#allocation3], 1
    %410 = vsyncpa [#allocation4], 1

</llo_original>
